<compile_context>
chip_gen: v7x
topology: tpu7x:2x2x1
jax: 0.10.0
libtpu: 0.0.40
codegen_flags: <defaults>
</compile_context>

<pallas_src>
import functools
import math

import numpy as np
import jax
import jax.numpy as jnp
from jax.experimental import pallas as pl
from jax.experimental.pallas import tpu as pltpu


def _round_up(a, b):
    return (a + b - 1) // b * b


# ---------------------------------------------------------------------------
# Kernel: one M-tile of   out = (rows @ W) + add_rows
#   rows_ref : (tile_m, K)  f32   patch rows; row 0 of each batch segment is a
#                                 zero "cls" row, trailing rows are zero pad
#   proj_ref : (K, E)       bf16  grid-invariant projection weight
#   add_ref  : (tile_m, E)  f32   additive term: cls+pos[0] on the cls row,
#                                 pos[1..N] on patch rows, 0 on padding rows
#   out_ref  : (tile_m, E)
# ---------------------------------------------------------------------------
def audio_patch_proj_kernel(rows_ref, proj_ref, add_ref, out_ref):
    lhs = rows_ref[...].astype(proj_ref.dtype)                 # f32->bf16 in-kernel (free)
    acc = jnp.dot(lhs, proj_ref[...],
                  preferred_element_type=jnp.float32)          # MXU, f32 accumulation
    out_ref[...] = (acc + add_ref[...]).astype(out_ref.dtype)  # f32 VPU epilogue


# ---------------------------------------------------------------------------
# Plain-JAX helpers (mirror AudioEncoder helpers; used for reference/fallback)
# ---------------------------------------------------------------------------
def extract_patches(x, patch_size, dynamic_patching=True):
    """Mirrors AudioEncoder.extract_patches: (B, C, L) -> (B, N, C*P)."""
    if x.ndim == 2:
        x = x[:, None, :]
    b, c, l = x.shape
    if dynamic_patching:
        pad = (-l) % patch_size
        if pad:
            x = jnp.pad(x, ((0, 0), (0, 0), (0, pad)))
        l = l + pad
    else:
        l = (l // patch_size) * patch_size
        x = x[:, :, :l]
    n = l // patch_size
    if c == 1:
        return x.reshape(b, n, patch_size)
    return x.reshape(b, c, n, patch_size).transpose(0, 2, 1, 3).reshape(b, n, c * patch_size)


def sinusoidal_position_embed(max_pos, embed_dim):
    """Mirrors AudioEncoder._init_sinusoidal_encoding."""
    pe = jnp.zeros((1, max_pos, embed_dim), jnp.float32)
    position = jnp.arange(max_pos, dtype=jnp.float32)[:, None]
    div_term = jnp.exp(jnp.arange(0, embed_dim, 2, dtype=jnp.float32)
                       * (-math.log(10000.0) / embed_dim))
    pe = pe.at[0, :, 0::2].set(jnp.sin(position * div_term))
    pe = pe.at[0, :, 1::2].set(jnp.cos(position * div_term))
    return pe


# ---------------------------------------------------------------------------
# Forward wrapper
# ---------------------------------------------------------------------------
def audio_encoder_forward(x, projection, cls_token, position_embed, patch_size,
                          *, dynamic_patching=True, tile_target=512,
                          out_dtype=jnp.float32, compute_dtype=jnp.bfloat16,
                          use_pallas=None, return_padded=False):
    """Projection + cls prepend + positional add of AudioEncoder.forward (eval).

    Returns (B, N+1, E), or (padded (B, S_pad, E), seq_len) if return_padded.
    """
    if x.ndim == 2:
        x = x[:, None, :]
    B, C, L = x.shape
    K = C * patch_size
    E = projection.shape[1]

    if dynamic_patching:
        N = -(-L // patch_size)
        used_len = L
    else:
        N = L // patch_size
        used_len = N * patch_size
        x = x[:, :, :used_len]
    seq = N + 1
    if seq > position_embed.shape[1]:
        raise ValueError(
            f"sequence length {seq} exceeds max_position_embeddings "
            f"{position_embed.shape[1]}")

    if use_pallas is None:
        # Genuinely tiny problems: pallas launch/pipeline overhead exceeds the
        # compute; one fused XLA dot+add is faster.
        use_pallas = (2 * B * seq * K * E) >= (1 << 23)

    if not use_pallas:
        patches = extract_patches(x, patch_size, dynamic_patching)
        proj = jnp.dot(patches.astype(compute_dtype), projection.astype(compute_dtype),
                       preferred_element_type=jnp.float32)
        cls = jnp.broadcast_to(cls_token.astype(jnp.float32), (B, 1, E))
        tok = (jnp.concatenate([cls, proj], axis=1)
               + position_embed[:, :seq].astype(jnp.float32)).astype(out_dtype)
        if return_padded:
            return tok, seq
        return tok

    # ---------------- tiling ----------------
    out_itemsize = np.dtype(out_dtype).itemsize
    w_itemsize = np.dtype(compute_dtype).itemsize
    vmem_budget = 24 << 20  # conservative per-step budget (fits v7x scoped default)

    def vmem_need(tm):
        # double-buffered rows + add + out tiles, plus the (revisited) weight block
        return 2 * (tm * K * 4 + tm * E * 4 + tm * E * out_itemsize + K * E * w_itemsize)

    if seq >= tile_target:
        # Large N: tile within each batch; tile_m multiple of 128 (v5e MXU).
        tile_m = max(128, _round_up(tile_target, 128))
        while vmem_need(tile_m) > vmem_budget and tile_m > 128:
            tile_m -= 128
        S_pad = _round_up(seq, tile_m)
        batches_per_tile = 1
        B_pad = B
        assert S_pad % tile_m == 0          # tiles never straddle batches
    else:
        # Small N: fuse as many batches per tile as fit (no artificial cap).
        # When everything fits in one tile this is a single grid step; when it
        # doesn't, every tile already carries >= ~256 rows, so a multi-tile
        # (megacore-shardable) grid only appears for real work.
        S_pad = _round_up(seq, 8)
        batches_per_tile = max(1, min(tile_target // S_pad, B))
        while vmem_need(batches_per_tile * S_pad) > vmem_budget and batches_per_tile > 1:
            batches_per_tile //= 2
        tile_m = batches_per_tile * S_pad
        B_pad = _round_up(B, batches_per_tile)

    M_pad = B_pad * S_pad
    assert M_pad % tile_m == 0
    num_tiles = M_pad // tile_m

    # ---------------- one-pass row construction ----------------
    # A single jnp.pad supplies, per batch: a leading zero patch (the cls row),
    # the dynamic-patching right pad, trailing zero rows up to S_pad, and zero
    # batches up to B_pad.  The stream stays f32; no K-pad, no bf16 copy.
    back = (S_pad - 1) * patch_size - used_len
    rows = jnp.pad(x.astype(jnp.float32),
                   ((0, B_pad - B), (0, 0), (patch_size, back)))
    if C == 1:
        rows = rows.reshape(B_pad, S_pad, patch_size)
    else:
        rows = rows.reshape(B_pad, C, S_pad, patch_size).transpose(0, 2, 1, 3)
    rows2d = rows.reshape(M_pad, K)                              # (M_pad, K) f32

    # Projection weight: one-time tiny cast; grid-invariant block.
    proj_w = projection.astype(compute_dtype)                    # (K, E)

    # Additive stream: row 0 = cls + pos[0]; rows 1..N = pos[1..N]; rest 0.
    add_rows = jnp.pad(position_embed[0, :seq, :].astype(jnp.float32),
                       ((0, S_pad - seq), (0, 0)))               # (S_pad, E)
    add_rows = add_rows.at[0, :].add(cls_token.reshape(E).astype(jnp.float32))
    if batches_per_tile > 1:
        add_pattern = jnp.tile(add_rows, (batches_per_tile, 1))  # (tile_m, E)
    else:
        add_pattern = add_rows                                   # (S_pad, E)
    pos_tiles = add_pattern.shape[0] // tile_m
    assert pos_tiles * tile_m == add_pattern.shape[0]

    if pos_tiles == 1:
        add_index_map = lambda i: (0, 0)                         # grid-invariant
    else:
        add_index_map = lambda i: (i % pos_tiles, 0)             # within-batch tile index

    cost = pl.CostEstimate(
        flops=2 * M_pad * K * E,
        transcendentals=0,
        bytes_accessed=(rows2d.size * 4 + proj_w.size * w_itemsize
                        + add_pattern.size * 4 + M_pad * E * out_itemsize))

    out2d = pl.pallas_call(
        audio_patch_proj_kernel,
        out_shape=jax.ShapeDtypeStruct((M_pad, E), out_dtype),
        grid_spec=pltpu.PrefetchScalarGridSpec(
            num_scalar_prefetch=0,
            grid=(num_tiles,),
            in_specs=[
                pl.BlockSpec((tile_m, K), lambda i: (i, 0)),     # K = full dim (no 128 pad)
                pl.BlockSpec((K, E), lambda i: (0, 0)),          # grid-invariant weight
                pl.BlockSpec((tile_m, E), add_index_map),        # pos / cls additive rows
            ],
            out_specs=pl.BlockSpec((tile_m, E), lambda i: (i, 0)),
        ),
        compiler_params=pltpu.CompilerParams(
            dimension_semantics=("parallel",)),
        cost_estimate=cost,
    )(rows2d, proj_w, add_pattern)

    out = out2d.reshape(B_pad, S_pad, E)
    if return_padded:
        return out[:B], seq          # padded layout + valid length (skips trim copy)
    return out[:B, :seq, :]          # (B, N+1, E)


# ---------------------------------------------------------------------------
if __name__ == "__main__":
    # Small, module-consistent config.
    B, C, L = 2, 1, 500          # audio_length = 500 (exercises dynamic padding)
    PATCH = 64                   # patch_size
    EMBED = 128                  # embed_dim
    MAX_POS = 16                 # max_position_embeddings

    key = jax.random.PRNGKey(0)
    kx, kp, kc = jax.random.split(key, 3)

    x = jax.random.normal(kx, (B, C, L), dtype=jnp.float32)

    # Deterministic parameter init (He init for projection, 0.02*randn for cls token).
    fan_in = PATCH * C
    projection = jax.random.normal(kp, (fan_in, EMBED), dtype=jnp.float32) * math.sqrt(2.0 / fan_in)
    cls_token = jax.random.normal(kc, (1, 1, EMBED), dtype=jnp.float32) * 0.02
    position_embed = sinusoidal_position_embed(MAX_POS, EMBED)

    # Force the Pallas path (auto-dispatch would pick plain XLA at this size).
    fwd = jax.jit(functools.partial(audio_encoder_forward, patch_size=PATCH,
                                    use_pallas=True))
    out = jax.block_until_ready(fwd(x, projection, cls_token, position_embed))

    # Pure-JAX reference (same bf16 rounding of the matmul inputs).
    patches_ref = extract_patches(x, PATCH)
    proj_out = jnp.einsum("bnk,ke->bne",
                          patches_ref.astype(jnp.bfloat16).astype(jnp.float32),
                          projection.astype(jnp.bfloat16).astype(jnp.float32))
    tokens_ref = jnp.concatenate(
        [jnp.broadcast_to(cls_token, (B, 1, EMBED)), proj_out], axis=1)
    expected = tokens_ref + position_embed[:, :tokens_ref.shape[1], :]

    n_expected = (L + (-L) % PATCH) // PATCH + 1
    assert out.shape == (B, n_expected, EMBED), out.shape
    assert jnp.allclose(out, expected, atol=2e-3, rtol=2e-3), \
        float(jnp.max(jnp.abs(out - expected)))
    print("KERNEL_OK")
</pallas_src>

<mosaic_0001>
module attributes {stable_mosaic.version = 11 : i64} {
  func.func @audio_patch_proj_kernel(%arg0: i32, %arg1: memref<32x64xf32, #tpu.memory_space<vmem>>, %arg2: memref<64x128xbf16, #tpu.memory_space<vmem>>, %arg3: memref<32x128xf32, #tpu.memory_space<vmem>>, %arg4: memref<32x128xf32, #tpu.memory_space<vmem>>) attributes {dimension_semantics = [#tpu.dimension_semantics<parallel>], iteration_bounds = array<i64: 1>, scalar_prefetch = 0 : i64, scratch_operands = 0 : i64, tpu.core_type = #tpu.core_type<tc>, window_params = [{transform_indices = @transform_0, window_bounds = array<i64: 32, 64>}, {pipeline_mode = #tpu.pipeline_mode<synchronous>, transform_indices = @transform_1, window_bounds = array<i64: 64, 128>}, {pipeline_mode = #tpu.pipeline_mode<synchronous>, transform_indices = @transform_2, window_bounds = array<i64: 32, 128>}, {transform_indices = @transform_3, window_bounds = array<i64: 32, 128>}]} {
    %c0 = arith.constant 0 : index
    %c0_0 = arith.constant 0 : index
    %0 = vector.load %arg1[%c0, %c0_0] : memref<32x64xf32, #tpu.memory_space<vmem>>, vector<32x64xf32>
    %1 = arith.truncf %0 : vector<32x64xf32> to vector<32x64xbf16>
    %c0_1 = arith.constant 0 : index
    %c0_2 = arith.constant 0 : index
    %2 = vector.load %arg2[%c0_1, %c0_2] : memref<64x128xbf16, #tpu.memory_space<vmem>>, vector<64x128xbf16>
    %cst = arith.constant dense<0.000000e+00> : vector<32x128xf32>
    %3 = tpu.matmul %1, %2, %cst {dimension_numbers = #tpu.dot_dimension_numbers<[1], [0], [0], [1], [0, 0, 1, 1], [], []>} : vector<32x64xbf16>, vector<64x128xbf16>, vector<32x128xf32> -> vector<32x128xf32>
    %c0_3 = arith.constant 0 : index
    %c0_4 = arith.constant 0 : index
    %4 = vector.load %arg3[%c0_3, %c0_4] : memref<32x128xf32, #tpu.memory_space<vmem>>, vector<32x128xf32>
    %5 = arith.addf %3, %4 : vector<32x128xf32>
    %c0_5 = arith.constant 0 : index
    %c0_6 = arith.constant 0 : index
    %6 = vector.load %arg4[%c0_5, %c0_6] : memref<32x128xf32, #tpu.memory_space<vmem>>, vector<32x128xf32>
    tpu.vector_store %arg4[%c0_5, %c0_6], %5 {strides = array<i32>} : memref<32x128xf32, #tpu.memory_space<vmem>>, vector<32x128xf32>,
    return
  }
  func.func @transform_0(%arg0: i32) -> (i32, i32) {
    %c0_i32 = arith.constant 0 : i32
    %c0_i32_0 = arith.constant 0 : i32
    return %arg0, %c0_i32 : i32, i32
  }
  func.func @transform_1(%arg0: i32) -> (i32, i32) {
    %c0_i32 = arith.constant 0 : i32
    %c0_i32_0 = arith.constant 0 : i32
    %c0_i32_1 = arith.constant 0 : i32
    return %c0_i32, %c0_i32_0 : i32, i32
  }
  func.func @transform_2(%arg0: i32) -> (i32, i32) {
    %c0_i32 = arith.constant 0 : i32
    %c0_i32_0 = arith.constant 0 : i32
    %c0_i32_1 = arith.constant 0 : i32
    return %c0_i32, %c0_i32_0 : i32, i32
  }
  func.func @transform_3(%arg0: i32) -> (i32, i32) {
    %c0_i32 = arith.constant 0 : i32
    %c0_i32_0 = arith.constant 0 : i32
    return %arg0, %c0_i32 : i32, i32
  }
}

</mosaic_0001>

<llo_original>
// kernel: audio_encoder_forward.1
$region0: #{audio_encoder_forward.1}
  #allocation0 [shape = 'u32[]', space=smem, size = 0x4, offset = 0x4, fixed_abs, tag = 'smem constant byte address 0x4 - core index']
  #allocation1 [shape = 'u32[144,128]{1,0:T(1,128)}', space=vmem, size = 0x12000, scoped, tag = 'internal scratch']
  %s0 = inlined_call_operand.vmem [shape: f32[32,64], index: 0, kind: input, shape index: {}]
  %s1 = inlined_call_operand.vmem [shape: bf16[64,128], index: 1, kind: input, shape index: {}]
  %s2 = inlined_call_operand.vmem [shape: f32[32,128], index: 2, kind: input, shape index: {}]
  %s3 = inlined_call_operand.vmem [shape: f32[32,128], index: 3, kind: output, shape index: {}]
  %s4 = sld [smem:[#allocation0]]
  $region22: #{audio_encoder_forward.1} parent=0
    _
  %s6 = ssub.s32 1, %s4
  %s7 = scalar_select 0, %s6, %s4
  // Predicated region
  $region2: #{audio_encoder_forward.1} parent=0 // pred_check
    _
  $region3: #{audio_encoder_forward.1} parent=0 // pred_check_branch
    %9 = sbr.rel (0) target = $region5
  $region4: #{audio_encoder_forward.1} parent=0 // pred_region
    _
  $region5: #{audio_encoder_forward.1} parent=0 // pred_fallthru
    _
  // Predicated region
  $region6: #{audio_encoder_forward.1} parent=0 // pred_check
    _
  $region7: #{audio_encoder_forward.1} parent=0 // pred_check_branch
    %11 = sbr.rel (0) target = $region9
  $region8: #{audio_encoder_forward.1} parent=0 // pred_region
    _
  $region9: #{audio_encoder_forward.1} parent=0 // pred_fallthru
    _
  // Predicated region
  $region10: #{audio_encoder_forward.1} parent=0 // pred_check
    _
  $region11: #{audio_encoder_forward.1} parent=0 // pred_check_branch
    %13 = sbr.rel (0) target = $region13
  $region12: #{audio_encoder_forward.1} parent=0 // pred_region
    _
  $region13: #{audio_encoder_forward.1} parent=0 // pred_fallthru
    _
  %v15 = vld [vmem:[%s0] sm:$0xff]
  %v16 = vld [vmem:[%s0 + $0x8] sm:$0xff]
  %v17 = vld [vmem:[%s0 + $0x10] sm:$0xff]
  %v18 = vld [vmem:[%s0 + $0x18] sm:$0xff]
  %v19 = vpack.c.bf16 %v16, %v15
  %v20 = vpack.c.bf16 %v18, %v17
  %v21 = vld [vmem:[%s1] sm:$0xf]
  %v22 = vld [vmem:[%s1 + $0x4] sm:$0xf]
  %v23 = vld [vmem:[%s1 + $0x8] sm:$0xf]
  %v24 = vld [vmem:[%s1 + $0xc] sm:$0xf]
  %v25 = vld [vmem:[%s1 + $0x10] sm:$0xf]
  %v26 = vld [vmem:[%s1 + $0x14] sm:$0xf]
  %v27 = vld [vmem:[%s1 + $0x18] sm:$0xf]
  %v28 = vld [vmem:[%s1 + $0x1c] sm:$0xf]
  %v29 = vld [vmem:[%s2] sm:$0xff]
  %v30 = vld [vmem:[%s2 + $0x8] sm:$0xff]
  %v31 = vld [vmem:[%s2 + $0x10] sm:$0xff]
  %v32 = vld [vmem:[%s2 + $0x18] sm:$0xff]
  %v41 = vunpack.c.l.b16 %v21
  %v42 = vunpack.c.l.b16 %v22
  %v43 = vunpack.c.l.b16 %v23
  %v44 = vunpack.c.l.b16 %v24
  %v45 = vunpack.c.l.b16 %v25
  %v46 = vunpack.c.l.b16 %v26
  %v47 = vunpack.c.l.b16 %v27
  %v48 = vunpack.c.l.b16 %v28
  %v49 = vpack.c.b16 %v42, %v41
  %v50 = vpack.c.b16 %v44, %v43
  %v51 = vpack.c.b16 %v46, %v45
  %v52 = vpack.c.b16 %v48, %v47
  %vm57 = vcmask 523264
  %v59 = vsel %vm57, %v19, 0
  %v62 = vsel %vm57, %v20, 0
  %64 = vmatprep.subr.bf16.mxu0 0
  %65 = vmatpush1.bf16.msra.mxu0 %v49
  %66 = vmatprep.subr.bf16.mxu0 0
  %67 = vmatpush1.bf16.msra.mxu0 %v50
  %68 = vmatprep.subr.bf16.mxu0 0
  %69 = vmatpush1.bf16.msra.mxu0 %v51
  %70 = vmatprep.subr.bf16.mxu0 0
  %71 = vmatpush1.bf16.msra.mxu0 %v52
  %72 = vmatprep.subr.bf16.mxu0 0
  %73 = vmatpush1.bf16.msra.mxu0 0
  %74 = vmatprep.subr.bf16.mxu0 0
  %75 = vmatpush1.bf16.msra.mxu0 0
  %76 = vmatprep.subr.bf16.mxu0 0
  %77 = vmatpush1.bf16.msra.mxu0 0
  %78 = vmatprep.subr.bf16.mxu0 0
  %79 = vmatpush1.bf16.msra.mxu0 0
  %80 = vmatprep.subr.bf16.mxu0 0
  %81 = vmatpush1.bf16.msra.mxu0 0
  %82 = vmatprep.subr.bf16.mxu0 0
  %83 = vmatpush1.bf16.msra.mxu0 0
  %84 = vmatprep.subr.bf16.mxu0 0
  %85 = vmatpush1.bf16.msra.mxu0 0
  %86 = vmatprep.subr.bf16.mxu0 0
  %87 = vmatpush1.bf16.msra.mxu0 0
  %88 = vmatprep.subr.bf16.mxu0 0
  %89 = vmatpush1.bf16.msra.mxu0 0
  %90 = vmatprep.subr.bf16.mxu0 0
  %91 = vmatpush1.bf16.msra.mxu0 0
  %92 = vmatprep.subr.bf16.mxu0 0
  %93 = vmatpush1.bf16.msra.mxu0 0
  %94 = vmatprep.subr.bf16.mxu0 0
  %95 = vmatpush1.bf16.msra.mxu0 0
  %96 = vmatprep.mubr.bf16.mxu0 0
  %97 = vmatmul.mubr.bf16.gmra.mrb[0].mxu0 %v59
  %v98 = vpop.f32.mrb[0].mxu0
  %v99 = vadd.f32 %v29, %v98
  %v100 = vpop.f32.mrb[0].mxu0
  %v101 = vpop.f32.mrb[0].mxu0
  %v102 = vadd.f32 %v30, %v101
  %v103 = vpop.f32.mrb[0].mxu0
  %104 = vmatprep.mubr.bf16.mxu0 0
  %105 = vmatmul.mubr.bf16.gmra.mrb[0].mxu0 %v62
  %v106 = vpop.f32.mrb[0].mxu0
  %v107 = vadd.f32 %v31, %v106
  %v108 = vpop.f32.mrb[0].mxu0
  %v109 = vpop.f32.mrb[0].mxu0
  %v110 = vadd.f32 %v32, %v109
  %v111 = vpop.f32.mrb[0].mxu0
  %112 = vdwg.mxu0
  %113 = vst [vmem:[%s3] sm:$0xff] %v99
  %114 = vst [vmem:[%s3 + $0x8] sm:$0xff] %v102
  %115 = vst [vmem:[%s3 + $0x10] sm:$0xff] %v107
  %116 = vst [vmem:[%s3 + $0x18] sm:$0xff] %v110
  // Predicated region
  $region14: #{audio_encoder_forward.1} parent=0 // pred_check
    _
  $region15: #{audio_encoder_forward.1} parent=0 // pred_check_branch
    %118 = sbr.rel (0) target = $region17
  $region16: #{audio_encoder_forward.1} parent=0 // pred_region
    _
  $region17: #{audio_encoder_forward.1} parent=0 // pred_fallthru
    _
  // Predicated region
  $region18: #{audio_encoder_forward.1} parent=0 // pred_check
    _
  $region19: #{audio_encoder_forward.1} parent=0 // pred_check_branch
    %120 = sbr.rel (0) target = $region21
  $region20: #{audio_encoder_forward.1} parent=0 // pred_region
    _
  $region21: #{audio_encoder_forward.1} parent=0 // pred_fallthru
    _

</llo_original>
